<compile_context>
chip_gen: v6e
topology: v6e:2x2x1
jax: 0.10.0
libtpu: 0.0.40
codegen_flags: <defaults>
</compile_context>

<pallas_src>
import jax
import jax.numpy as jnp
from jax.experimental import pallas as pl
from jax.experimental.pallas import tpu as pltpu

IN_FEATURES = 32
HIDDEN1 = 128
HIDDEN2 = 64
OUT_CLASSES = 13
OUT_PAD = 128  # lane-dense padded class dimension


def playcard_kernel(x_ref, w1_ref, b1_ref, w2_ref, b2_ref, w3_ref, b3_ref,
                    ones_ref, o_ref):
    # x tile arrives f32; cast to bf16 in-kernel (avoids a separate HBM cast pass).
    x = x_ref[...].astype(jnp.bfloat16)

    # fc1 + ReLU -> (TB, 128); bf16 operands, f32 MXU accumulation.
    h1 = jnp.dot(x, w1_ref[...], preferred_element_type=jnp.float32) + b1_ref[...]
    h1 = jnp.maximum(h1, 0.0).astype(jnp.bfloat16)

    # fc2 + ReLU -> (TB, 64)
    h2 = jnp.dot(h1, w2_ref[...], preferred_element_type=jnp.float32) + b2_ref[...]
    h2 = jnp.maximum(h2, 0.0).astype(jnp.bfloat16)

    # fc3 -> (TB, 128).  Padded lanes: zero weights + (-1e9) bias -> exp ~ 0.
    logits = jnp.dot(h2, w3_ref[...], preferred_element_type=jnp.float32) + b3_ref[...]

    # Numerically stable softmax over the padded class axis.
    m = jnp.max(logits, axis=-1, keepdims=True)          # XLU
    e = jnp.exp(logits - m)                               # EUP, f32
    # Row-sum on the MXU via ones-matmul: frees the XLU and yields the
    # denominator already broadcast across all 128 lanes.
    denom = jnp.dot(e.astype(jnp.bfloat16), ones_ref[...],
                    preferred_element_type=jnp.float32)
    o_ref[...] = (e * pl.reciprocal(denom, approx=True)).astype(o_ref.dtype)


def prepare_params(params):
    """One-time param prep (hoisted out of the per-call path): dtype casts and
    lane-dense padding of fc3 from 13 -> 128 classes."""
    w3 = params["w3"].astype(jnp.float32)
    b3 = params["b3"].astype(jnp.float32).reshape(1, OUT_CLASSES)
    w3p = (jnp.zeros((HIDDEN2, OUT_PAD), jnp.float32)
           .at[:, :OUT_CLASSES].set(w3)).astype(jnp.bfloat16)
    b3p = jnp.full((1, OUT_PAD), -1e9, jnp.float32).at[:, :OUT_CLASSES].set(b3)
    return {
        "w1": params["w1"].astype(jnp.bfloat16),
        "b1": params["b1"].astype(jnp.float32).reshape(1, HIDDEN1),
        "w2": params["w2"].astype(jnp.bfloat16),
        "b2": params["b2"].astype(jnp.float32).reshape(1, HIDDEN2),
        "w3p": w3p,
        "b3p": b3p,
        "ones": jnp.ones((OUT_PAD, OUT_PAD), jnp.bfloat16),
    }


def playcard_net(x, params, *, tb=4096, unpad=True, core_parallel=False):
    """x: (B, 32) float.  params: raw {w1,b1,...} (weights stored (in,out)) or
    the output of prepare_params().  Returns (B, 13) bf16 softmax probs
    (or the padded (b_pad, 128) array if unpad=False)."""
    if "w3p" not in params:
        params = prepare_params(params)

    B = x.shape[0]
    # Large batch tile (amortise ~0.35us/step grid overhead), multiple of 8,
    # capped so the double-buffered footprint stays well inside scoped VMEM on
    # every generation (v7x has only 64 MiB physical / 32 MiB scoped default).
    tb = int(min(min(tb, 8192), max(8, -(-B // 8) * 8)))
    b_pad = -(-B // tb) * tb
    if b_pad != B:
        x = jnp.pad(x, ((0, b_pad - B), (0, 0)))
    x = x.astype(jnp.float32)  # bf16 cast happens inside the kernel

    resident = lambda i: (0, 0)  # weights/biases/ones: same block every step

    flops = 2 * b_pad * (IN_FEATURES * HIDDEN1 + HIDDEN1 * HIDDEN2
                         + HIDDEN2 * OUT_PAD + OUT_PAD * OUT_PAD)
    transcendentals = b_pad * OUT_PAD
    bytes_accessed = (b_pad * IN_FEATURES * 4 + b_pad * OUT_PAD * 2
                      + IN_FEATURES * HIDDEN1 * 2 + HIDDEN1 * 4
                      + HIDDEN1 * HIDDEN2 * 2 + HIDDEN2 * 4
                      + HIDDEN2 * OUT_PAD * 2 + OUT_PAD * 4
                      + OUT_PAD * OUT_PAD * 2)

    # pltpu.CORE_PARALLEL splits the batch grid across v7x's two TensorCores;
    # plain "parallel" is the safe default for single-TC v5e/v6e.
    semantics = (pltpu.CORE_PARALLEL,) if core_parallel else ("parallel",)

    out = pl.pallas_call(
        playcard_kernel,
        out_shape=jax.ShapeDtypeStruct((b_pad, OUT_PAD), jnp.bfloat16),
        grid=(b_pad // tb,),
        in_specs=[
            pl.BlockSpec((tb, IN_FEATURES), lambda i: (i, 0)),
            pl.BlockSpec((IN_FEATURES, HIDDEN1), resident),
            pl.BlockSpec((1, HIDDEN1), resident),
            pl.BlockSpec((HIDDEN1, HIDDEN2), resident),
            pl.BlockSpec((1, HIDDEN2), resident),
            pl.BlockSpec((HIDDEN2, OUT_PAD), resident),
            pl.BlockSpec((1, OUT_PAD), resident),
            pl.BlockSpec((OUT_PAD, OUT_PAD), resident),
        ],
        out_specs=pl.BlockSpec((tb, OUT_PAD), lambda i: (i, 0)),
        compiler_params=pltpu.CompilerParams(
            dimension_semantics=semantics,
            vmem_limit_bytes=32 * 1024 * 1024,  # safe on v5e/v6e/v7x
        ),
        cost_estimate=pl.CostEstimate(
            flops=flops,
            transcendentals=transcendentals,
            bytes_accessed=bytes_accessed,
        ),
    )(x, params["w1"], params["b1"], params["w2"], params["b2"],
      params["w3p"], params["b3p"], params["ones"])

    if unpad:
        # Matches the PyTorch module's (B, 13) contract.  For fully fused
        # pipelines, pass unpad=False and let the consumer take [:, :13].
        return out[:B, :OUT_CLASSES]
    return out  # (b_pad, 128) bf16; lanes >= 13 are ~0


def init_params(key):
    """Deterministic synthetic init (PyTorch-ish uniform fan_in scaling)."""
    def linear(k, fan_in, fan_out):
        k_w, k_b = jax.random.split(k)
        bound = 1.0 / (fan_in ** 0.5)
        # stored as (in, out) so kernel computes x @ W, matching y = x W^T + b
        w = jax.random.uniform(k_w, (fan_in, fan_out), jnp.float32, -bound, bound)
        b = jax.random.uniform(k_b, (1, fan_out), jnp.float32, -bound, bound)
        return w, b

    k1, k2, k3 = jax.random.split(key, 3)
    w1, b1 = linear(k1, IN_FEATURES, HIDDEN1)
    w2, b2 = linear(k2, HIDDEN1, HIDDEN2)
    w3, b3 = linear(k3, HIDDEN2, OUT_CLASSES)
    return {"w1": w1, "b1": b1, "w2": w2, "b2": b2, "w3": w3, "b3": b3}


def reference(x, params):
    """Pure-JAX f32 reference matching the PyTorch forward."""
    h1 = jnp.maximum(x @ params["w1"] + params["b1"], 0.0)
    h2 = jnp.maximum(h1 @ params["w2"] + params["b2"], 0.0)
    logits = h2 @ params["w3"] + params["b3"]
    return jax.nn.softmax(logits, axis=-1)


if __name__ == "__main__":
    key = jax.random.PRNGKey(0)
    k_params, k_x = jax.random.split(key)

    raw_params = init_params(k_params)
    params = prepare_params(raw_params)   # one-time prep (casts + fc3 padding)

    batch = 8
    x = jax.random.normal(k_x, (batch, IN_FEATURES), dtype=jnp.float32)

    out = playcard_net(x, params)
    out = jax.block_until_ready(out)

    assert out.shape == (batch, OUT_CLASSES)

    out_f32 = out.astype(jnp.float32)

    # softmax rows sum to ~1 (approx reciprocal + bf16 MXU sum + bf16 output)
    row_sums = jnp.sum(out_f32, axis=1)
    assert bool(jnp.all(jnp.abs(row_sums - 1.0) < 2e-2)), row_sums

    # matches the f32 reference within bf16 / approx-reciprocal tolerance
    ref = reference(x, raw_params)
    max_err = float(jnp.max(jnp.abs(out_f32 - ref)))
    assert max_err < 4e-2, max_err

    print("KERNEL_OK")
</pallas_src>

<mosaic_0001>
module attributes {stable_mosaic.version = 11 : i64} {
  func.func @playcard_kernel(%arg0: i32, %arg1: memref<8x32xf32, #tpu.memory_space<vmem>>, %arg2: memref<32x128xbf16, #tpu.memory_space<vmem>>, %arg3: memref<1x128xf32, #tpu.memory_space<vmem>>, %arg4: memref<128x64xbf16, #tpu.memory_space<vmem>>, %arg5: memref<1x64xf32, #tpu.memory_space<vmem>>, %arg6: memref<64x128xbf16, #tpu.memory_space<vmem>>, %arg7: memref<1x128xf32, #tpu.memory_space<vmem>>, %arg8: memref<128x128xbf16, #tpu.memory_space<vmem>>, %arg9: memref<8x128xbf16, #tpu.memory_space<vmem>>) attributes {dimension_semantics = [#tpu.dimension_semantics<parallel>], iteration_bounds = array<i64: 1>, scalar_prefetch = 0 : i64, scratch_operands = 0 : i64, tpu.core_type = #tpu.core_type<tc>, window_params = [{transform_indices = @transform_0, window_bounds = array<i64: 8, 32>}, {pipeline_mode = #tpu.pipeline_mode<synchronous>, transform_indices = @transform_1, window_bounds = array<i64: 32, 128>}, {pipeline_mode = #tpu.pipeline_mode<synchronous>, transform_indices = @transform_2, window_bounds = array<i64: 1, 128>}, {pipeline_mode = #tpu.pipeline_mode<synchronous>, transform_indices = @transform_3, window_bounds = array<i64: 128, 64>}, {pipeline_mode = #tpu.pipeline_mode<synchronous>, transform_indices = @transform_4, window_bounds = array<i64: 1, 64>}, {pipeline_mode = #tpu.pipeline_mode<synchronous>, transform_indices = @transform_5, window_bounds = array<i64: 64, 128>}, {pipeline_mode = #tpu.pipeline_mode<synchronous>, transform_indices = @transform_6, window_bounds = array<i64: 1, 128>}, {pipeline_mode = #tpu.pipeline_mode<synchronous>, transform_indices = @transform_7, window_bounds = array<i64: 128, 128>}, {transform_indices = @transform_8, window_bounds = array<i64: 8, 128>}]} {
    %c0 = arith.constant 0 : index
    %c0_0 = arith.constant 0 : index
    %0 = vector.load %arg1[%c0, %c0_0] : memref<8x32xf32, #tpu.memory_space<vmem>>, vector<8x32xf32>
    %1 = arith.truncf %0 : vector<8x32xf32> to vector<8x32xbf16>
    %c0_1 = arith.constant 0 : index
    %c0_2 = arith.constant 0 : index
    %2 = vector.load %arg2[%c0_1, %c0_2] : memref<32x128xbf16, #tpu.memory_space<vmem>>, vector<32x128xbf16>
    %cst = arith.constant dense<0.000000e+00> : vector<8x128xf32>
    %3 = tpu.matmul %1, %2, %cst {dimension_numbers = #tpu.dot_dimension_numbers<[1], [0], [0], [1], [0, 0, 1, 1], [], []>} : vector<8x32xbf16>, vector<32x128xbf16>, vector<8x128xf32> -> vector<8x128xf32>
    %c0_3 = arith.constant 0 : index
    %c0_4 = arith.constant 0 : index
    %4 = vector.load %arg3[%c0_3, %c0_4] : memref<1x128xf32, #tpu.memory_space<vmem>>, vector<1x128xf32>
    %5 = vector.broadcast %4 : vector<1x128xf32> to vector<8x128xf32>
    %6 = arith.addf %3, %5 : vector<8x128xf32>
    %cst_5 = arith.constant 0.000000e+00 : f32
    %7 = vector.broadcast %cst_5 : f32 to vector<8x128xf32>
    %8 = arith.maximumf %6, %7 : vector<8x128xf32>
    %9 = arith.truncf %8 : vector<8x128xf32> to vector<8x128xbf16>
    %c0_6 = arith.constant 0 : index
    %c0_7 = arith.constant 0 : index
    %10 = vector.load %arg4[%c0_6, %c0_7] : memref<128x64xbf16, #tpu.memory_space<vmem>>, vector<128x64xbf16>
    %cst_8 = arith.constant dense<0.000000e+00> : vector<8x64xf32>
    %11 = tpu.matmul %9, %10, %cst_8 {dimension_numbers = #tpu.dot_dimension_numbers<[1], [0], [0], [1], [0, 0, 1, 1], [], []>} : vector<8x128xbf16>, vector<128x64xbf16>, vector<8x64xf32> -> vector<8x64xf32>
    %c0_9 = arith.constant 0 : index
    %c0_10 = arith.constant 0 : index
    %12 = vector.load %arg5[%c0_9, %c0_10] : memref<1x64xf32, #tpu.memory_space<vmem>>, vector<1x64xf32>
    %13 = vector.broadcast %12 : vector<1x64xf32> to vector<8x64xf32>
    %14 = arith.addf %11, %13 : vector<8x64xf32>
    %cst_11 = arith.constant 0.000000e+00 : f32
    %15 = vector.broadcast %cst_11 : f32 to vector<8x64xf32>
    %16 = arith.maximumf %14, %15 : vector<8x64xf32>
    %17 = arith.truncf %16 : vector<8x64xf32> to vector<8x64xbf16>
    %c0_12 = arith.constant 0 : index
    %c0_13 = arith.constant 0 : index
    %18 = vector.load %arg6[%c0_12, %c0_13] : memref<64x128xbf16, #tpu.memory_space<vmem>>, vector<64x128xbf16>
    %cst_14 = arith.constant dense<0.000000e+00> : vector<8x128xf32>
    %19 = tpu.matmul %17, %18, %cst_14 {dimension_numbers = #tpu.dot_dimension_numbers<[1], [0], [0], [1], [0, 0, 1, 1], [], []>} : vector<8x64xbf16>, vector<64x128xbf16>, vector<8x128xf32> -> vector<8x128xf32>
    %c0_15 = arith.constant 0 : index
    %c0_16 = arith.constant 0 : index
    %20 = vector.load %arg7[%c0_15, %c0_16] : memref<1x128xf32, #tpu.memory_space<vmem>>, vector<1x128xf32>
    %21 = vector.broadcast %20 : vector<1x128xf32> to vector<8x128xf32>
    %22 = arith.addf %19, %21 : vector<8x128xf32>
    %cst_17 = arith.constant dense<0xFF800000> : vector<8xf32>
    %23 = vector.multi_reduction <maximumf>, %22, %cst_17 [1] : vector<8x128xf32> to vector<8xf32>
    %24 = vector.shape_cast %23 : vector<8xf32> to vector<8x1xf32>
    %25 = vector.broadcast %24 : vector<8x1xf32> to vector<8x128xf32>
    %26 = arith.subf %22, %25 : vector<8x128xf32>
    %27 = math.exp %26 : vector<8x128xf32>
    %28 = arith.truncf %27 : vector<8x128xf32> to vector<8x128xbf16>
    %c0_18 = arith.constant 0 : index
    %c0_19 = arith.constant 0 : index
    %29 = vector.load %arg8[%c0_18, %c0_19] : memref<128x128xbf16, #tpu.memory_space<vmem>>, vector<128x128xbf16>
    %cst_20 = arith.constant dense<0.000000e+00> : vector<8x128xf32>
    %30 = tpu.matmul %28, %29, %cst_20 {dimension_numbers = #tpu.dot_dimension_numbers<[1], [0], [0], [1], [0, 0, 1, 1], [], []>} : vector<8x128xbf16>, vector<128x128xbf16>, vector<8x128xf32> -> vector<8x128xf32>
    %31 = tpu.reciprocal %30 {approx = true} : vector<8x128xf32> -> vector<8x128xf32>
    %32 = arith.mulf %27, %31 : vector<8x128xf32>
    %33 = arith.truncf %32 : vector<8x128xf32> to vector<8x128xbf16>
    %c0_21 = arith.constant 0 : index
    %c0_22 = arith.constant 0 : index
    %34 = vector.load %arg9[%c0_21, %c0_22] : memref<8x128xbf16, #tpu.memory_space<vmem>>, vector<8x128xbf16>
    tpu.vector_store %arg9[%c0_21, %c0_22], %33 {strides = array<i32>} : memref<8x128xbf16, #tpu.memory_space<vmem>>, vector<8x128xbf16>,
    return
  }
  func.func @transform_0(%arg0: i32) -> (i32, i32) {
    %c0_i32 = arith.constant 0 : i32
    %c0_i32_0 = arith.constant 0 : i32
    return %arg0, %c0_i32 : i32, i32
  }
  func.func @transform_1(%arg0: i32) -> (i32, i32) {
    %c0_i32 = arith.constant 0 : i32
    %c0_i32_0 = arith.constant 0 : i32
    %c0_i32_1 = arith.constant 0 : i32
    return %c0_i32, %c0_i32_0 : i32, i32
  }
  func.func @transform_2(%arg0: i32) -> (i32, i32) {
    %c0_i32 = arith.constant 0 : i32
    %c0_i32_0 = arith.constant 0 : i32
    %c0_i32_1 = arith.constant 0 : i32
    return %c0_i32, %c0_i32_0 : i32, i32
  }
  func.func @transform_3(%arg0: i32) -> (i32, i32) {
    %c0_i32 = arith.constant 0 : i32
    %c0_i32_0 = arith.constant 0 : i32
    %c0_i32_1 = arith.constant 0 : i32
    return %c0_i32, %c0_i32_0 : i32, i32
  }
  func.func @transform_4(%arg0: i32) -> (i32, i32) {
    %c0_i32 = arith.constant 0 : i32
    %c0_i32_0 = arith.constant 0 : i32
    %c0_i32_1 = arith.constant 0 : i32
    return %c0_i32, %c0_i32_0 : i32, i32
  }
  func.func @transform_5(%arg0: i32) -> (i32, i32) {
    %c0_i32 = arith.constant 0 : i32
    %c0_i32_0 = arith.constant 0 : i32
    %c0_i32_1 = arith.constant 0 : i32
    return %c0_i32, %c0_i32_0 : i32, i32
  }
  func.func @transform_6(%arg0: i32) -> (i32, i32) {
    %c0_i32 = arith.constant 0 : i32
    %c0_i32_0 = arith.constant 0 : i32
    %c0_i32_1 = arith.constant 0 : i32
    return %c0_i32, %c0_i32_0 : i32, i32
  }
  func.func @transform_7(%arg0: i32) -> (i32, i32) {
    %c0_i32 = arith.constant 0 : i32
    %c0_i32_0 = arith.constant 0 : i32
    %c0_i32_1 = arith.constant 0 : i32
    return %c0_i32, %c0_i32_0 : i32, i32
  }
  func.func @transform_8(%arg0: i32) -> (i32, i32) {
    %c0_i32 = arith.constant 0 : i32
    %c0_i32_0 = arith.constant 0 : i32
    return %arg0, %c0_i32 : i32, i32
  }
}

</mosaic_0001>

<llo_original>
// kernel: tpu_custom_call.1
$region0: #{tpu_custom_call.1}
  #allocation0 [shape = 'u32[]', space=smem, size = 0x4, offset = 0x4, fixed_abs, tag = 'smem constant byte address 0x4 - core index']
  #allocation1 [shape = 'u32[144,128]{1,0:T(1,128)}', space=vmem, size = 0x12000, scoped, tag = 'internal scratch']
  %s0 = inlined_call_operand.vmem [shape: f32[8,32], index: 0, kind: input, shape index: {}]
  %s1 = inlined_call_operand.hbm [shape: bf16[32,128], index: 1, kind: input, shape index: {}]
  %s2 = inlined_call_operand.vmem [shape: f32[1,128], index: 2, kind: input, shape index: {}]
  %s3 = inlined_call_operand.vmem [shape: bf16[128,64], index: 3, kind: input, shape index: {}]
  %s4 = inlined_call_operand.vmem [shape: f32[1,64], index: 4, kind: input, shape index: {}]
  %s5 = inlined_call_operand.vmem [shape: bf16[64,128], index: 5, kind: input, shape index: {}]
  %s6 = inlined_call_operand.vmem [shape: f32[1,128], index: 6, kind: input, shape index: {}]
  %s7 = inlined_call_operand.vmem [shape: bf16[128,128], index: 7, kind: input, shape index: {}]
  %s8 = inlined_call_operand.hbm [shape: bf16[8,128], index: 8, kind: output, shape index: {}]
  %s9 = sld [smem:[#allocation0]]
  $region46: #{tpu_custom_call.1} parent=0
    _
  %s11 = ssub.s32 1, %s9
  %s12 = scalar_select 0, %s11, %s9
  $region1: #{tpu_custom_call.1} parent=0
    #allocation2 [shape = 'u8[8192]{0}', space=vmem, size = 0x2000, scoped, tag = 'input window, operand 1, single buffered']
    #allocation3 [shape = 's32[1]{0}', space=sflag, size = 0x4, scoped, tag = 'scoped memory for tpu_custom_call.1']
    #allocation4 [shape = 's32[1]{0}', space=sflag, size = 0x4, scoped, tag = 'scoped memory for tpu_custom_call.1']
    #allocation5 [shape = 'u8[2048]{0}', space=vmem, size = 0x800, scoped, tag = 'output window, operand 0, single buffered']
    %13 = vsyncpa [#allocation3], 0
    %14 = vsyncpa [#allocation4], 0
    // Predicated region
    $region2: #{tpu_custom_call.1} parent=1 // pred_check
      _
    $region3: #{tpu_custom_call.1} parent=1 // pred_check_branch
      %16 = sbr.rel (0) target = $region5
    $region4: #{tpu_custom_call.1} parent=1 // pred_region
      _
    $region5: #{tpu_custom_call.1} parent=1 // pred_fallthru
      _
    // Predicated region
    $region6: #{tpu_custom_call.1} parent=1 // pred_check
      _
    $region7: #{tpu_custom_call.1} parent=1 // pred_check_branch
      %18 = sbr.rel (0) target = $region9
    $region8: #{tpu_custom_call.1} parent=1 // pred_region
      %s20 = ssub.s32 256, 256
      %21 = vsyncadd [#allocation3], %s20
      %s22 = sshll.u32 [#allocation2], 4
      %s23 = int_to_ptr.vmem [resolvable:$true] %s22
      %28 = dma.hbm_to_vmem [thread:$0]  %s1, 256, %s23, [#allocation3], 64, 64, 4
    $region9: #{tpu_custom_call.1} parent=1 // pred_fallthru
      _
    // Predicated region
    $region10: #{tpu_custom_call.1} parent=1 // pred_check
      _
    $region11: #{tpu_custom_call.1} parent=1 // pred_check_branch
      %30 = sbr.rel (0) target = $region13
    $region12: #{tpu_custom_call.1} parent=1 // pred_region
      _
    $region13: #{tpu_custom_call.1} parent=1 // pred_fallthru
      _
    // Predicated region
    $region14: #{tpu_custom_call.1} parent=1 // pred_check
      _
    $region15: #{tpu_custom_call.1} parent=1 // pred_check_branch
      %32 = sbr.rel (0) target = $region17
    $region16: #{tpu_custom_call.1} parent=1 // pred_region
      _
    $region17: #{tpu_custom_call.1} parent=1 // pred_fallthru
      _
    // Predicated region
    $region18: #{tpu_custom_call.1} parent=1 // pred_check
      _
    $region19: #{tpu_custom_call.1} parent=1 // pred_check_branch
      %34 = sbr.rel (0) target = $region21
    $region20: #{tpu_custom_call.1} parent=1 // pred_region
      _
    $region21: #{tpu_custom_call.1} parent=1 // pred_fallthru
      _
    // Predicated region
    $region22: #{tpu_custom_call.1} parent=1 // pred_check
      _
    $region23: #{tpu_custom_call.1} parent=1 // pred_check_branch
      %36 = sbr.rel (0) target = $region25
    $region24: #{tpu_custom_call.1} parent=1 // pred_region
      _
    $region25: #{tpu_custom_call.1} parent=1 // pred_fallthru
      _
    // Predicated region
    $region26: #{tpu_custom_call.1} parent=1 // pred_check
      _
    $region27: #{tpu_custom_call.1} parent=1 // pred_check_branch
      %38 = sbr.rel (0) target = $region29
    $region28: #{tpu_custom_call.1} parent=1 // pred_region
      _
    $region29: #{tpu_custom_call.1} parent=1 // pred_fallthru
      _
    // Predicated region
    $region30: #{tpu_custom_call.1} parent=1 // pred_check
      _
    $region31: #{tpu_custom_call.1} parent=1 // pred_check_branch
      %40 = sbr.rel (0) target = $region33
    $region32: #{tpu_custom_call.1} parent=1 // pred_region
      _
    $region33: #{tpu_custom_call.1} parent=1 // pred_fallthru
      _
    // Predicated region
    $region34: #{tpu_custom_call.1} parent=1 // pred_check
      _
    $region35: #{tpu_custom_call.1} parent=1 // pred_check_branch
      %42 = sbr.rel (0) target = $region37
    $region36: #{tpu_custom_call.1} parent=1 // pred_region
      %43 = dma.done [#allocation3], 256
    $region37: #{tpu_custom_call.1} parent=1 // pred_fallthru
      _
    %v45 = vld [vmem:[%s0] sm:$0xff]
    %v46 = vpack.c.bf16 %v45, %v45
    %v47 = vld [vmem:[#allocation2] sm:$0xf]
    %v48 = vld [vmem:[#allocation2 + $0x4] sm:$0xf]
    %v49 = vld [vmem:[#allocation2 + $0x8] sm:$0xf]
    %v50 = vld [vmem:[#allocation2 + $0xc] sm:$0xf]
    %v51 = vld [vmem:[%s2] sm:$0x1]
    %v53 = vlaneseq
    %v54 = vshrl.u32 %v53, 7
    %v55 = vsub.s32 0, %v54
    %v56 = vrot.slane %v51, %v55
    %v62 = vunpack.c.l.b16 %v47
    %v63 = vunpack.c.l.b16 %v48
    %v64 = vunpack.c.l.b16 %v49
    %v65 = vunpack.c.l.b16 %v50
    %v66 = vpack.c.b16 %v63, %v62
    %v67 = vpack.c.b16 %v65, %v64
    %vm70 = vcmask 261120
    %v72 = vsel %vm70, %v46, 0
    %74 = vmatprep.subr.bf16.mxu0 0
    %75 = vmatpush1.bf16.msra.mxu0 0
    %76 = vmatprep.subr.bf16.mxu0 0
    %77 = vmatpush1.bf16.msra.mxu0 0
    %78 = vmatprep.subr.bf16.mxu0 0
    %79 = vmatpush1.bf16.msra.mxu0 0
    %80 = vmatprep.subr.bf16.mxu0 0
    %81 = vmatpush1.bf16.msra.mxu0 0
    %82 = vmatprep.subr.bf16.mxu0 0
    %83 = vmatpush1.bf16.msra.mxu0 0
    %84 = vmatprep.subr.bf16.mxu0 0
    %85 = vmatpush1.bf16.msra.mxu0 0
    %86 = vmatprep.subr.bf16.mxu0 0
    %87 = vmatpush1.bf16.msra.mxu0 %v67
    %88 = vmatprep.subr.bf16.mxu0 0
    %89 = vmatpush1.bf16.msra.mxu0 %v66
    %90 = vmatprep.subr.bf16.mxu0 0
    %91 = vmatpush2.bf16.msra.mxu0 0
    %92 = vmatprep.subr.bf16.mxu0 0
    %93 = vmatpush2.bf16.msra.mxu0 0
    %94 = vmatprep.subr.bf16.mxu0 0
    %95 = vmatpush2.bf16.msra.mxu0 0
    %96 = vmatprep.subr.bf16.mxu0 0
    %97 = vmatpush2.bf16.msra.mxu0 0
    %98 = vmatprep.subr.bf16.mxu0 0
    %99 = vmatpush2.bf16.msra.mxu0 0
    %100 = vmatprep.subr.bf16.mxu0 0
    %101 = vmatpush2.bf16.msra.mxu0 0
    %102 = vmatprep.subr.bf16.mxu0 0
    %103 = vmatpush2.bf16.msra.mxu0 0
    %104 = vmatprep.subr.bf16.mxu0 0
    %105 = vmatpush2.bf16.msra.mxu0 0
    %106 = vmatprep.mubr.bf16.mxu0 0
    %107 = vmatmul.mubr.bf16.gmra.mxu0 %v72
    %v108 = vpop.f32.mrf.mxu0
    %v109 = vadd.f32 %v56, %v108
    %v110 = vpop.f32.mrf.mxu0
    %v111 = vpop.f32.mrf.mxu0
    %v112 = vpop.f32.mrf.mxu0
    %113 = vdwg.mxu0
    %v114 = vmax.f32 %v109, 0.0
    %v115 = vpack.c.bf16 %v114, %v114
    %v116 = vld [vmem:[%s3] sm:$0xf]
    %v117 = vld [vmem:[%s3 + $0x4] sm:$0xf]
    %v118 = vld [vmem:[%s3 + $0x8] sm:$0xf]
    %v119 = vld [vmem:[%s3 + $0xc] sm:$0xf]
    %v120 = vld [vmem:[%s3 + $0x10] sm:$0xf]
    %v121 = vld [vmem:[%s3 + $0x14] sm:$0xf]
    %v122 = vld [vmem:[%s3 + $0x18] sm:$0xf]
    %v123 = vld [vmem:[%s3 + $0x1c] sm:$0xf]
    %v124 = vld [vmem:[%s3 + $0x20] sm:$0xf]
    %v125 = vld [vmem:[%s3 + $0x24] sm:$0xf]
    %v126 = vld [vmem:[%s3 + $0x28] sm:$0xf]
    %v127 = vld [vmem:[%s3 + $0x2c] sm:$0xf]
    %v128 = vld [vmem:[%s3 + $0x30] sm:$0xf]
    %v129 = vld [vmem:[%s3 + $0x34] sm:$0xf]
    %v130 = vld [vmem:[%s3 + $0x38] sm:$0xf]
    %v131 = vld [vmem:[%s3 + $0x3c] sm:$0xf]
    %v132 = vld [vmem:[%s4] sm:$0x1]
    %v134 = vlaneseq
    %v135 = vshrl.u32 %v134, 7
    %v136 = vsub.s32 0, %v135
    %v137 = vrot.slane %v132, %v136
    %v155 = vunpack.c.l.b16 %v116
    %v156 = vunpack.c.l.b16 %v117
    %v157 = vunpack.c.l.b16 %v118
    %v158 = vunpack.c.l.b16 %v119
    %v159 = vunpack.c.l.b16 %v120
    %v160 = vunpack.c.l.b16 %v121
    %v161 = vunpack.c.l.b16 %v122
    %v162 = vunpack.c.l.b16 %v123
    %v163 = vunpack.c.l.b16 %v124
    %v164 = vunpack.c.l.b16 %v125
    %v165 = vunpack.c.l.b16 %v126
    %v166 = vunpack.c.l.b16 %v127
    %v167 = vunpack.c.l.b16 %v128
    %v168 = vunpack.c.l.b16 %v129
    %v169 = vunpack.c.l.b16 %v130
    %v170 = vunpack.c.l.b16 %v131
    %v171 = vpack.c.b16 %v156, %v155
    %v172 = vpack.c.b16 %v158, %v157
    %v173 = vpack.c.b16 %v160, %v159
    %v174 = vpack.c.b16 %v162, %v161
    %v175 = vpack.c.b16 %v164, %v163
    %v176 = vpack.c.b16 %v166, %v165
    %v177 = vpack.c.b16 %v168, %v167
    %v178 = vpack.c.b16 %v170, %v169
    %187 = vmatprep.subr.bf16.mxu0 0
    %188 = vmatpush1.bf16.msra.mxu0 %v178
    %189 = vmatprep.subr.bf16.mxu0 0
    %190 = vmatpush1.bf16.msra.mxu0 %v177
    %191 = vmatprep.subr.bf16.mxu0 0
    %192 = vmatpush1.bf16.msra.mxu0 %v176
    %193 = vmatprep.subr.bf16.mxu0 0
    %194 = vmatpush1.bf16.msra.mxu0 %v175
    %195 = vmatprep.subr.bf16.mxu0 0
    %196 = vmatpush1.bf16.msra.mxu0 %v174
    %197 = vmatprep.subr.bf16.mxu0 0
    %198 = vmatpush1.bf16.msra.mxu0 %v173
    %199 = vmatprep.subr.bf16.mxu0 0
    %200 = vmatpush1.bf16.msra.mxu0 %v172
    %201 = vmatprep.subr.bf16.mxu0 0
    %202 = vmatpush1.bf16.msra.mxu0 %v171
    %203 = vmatprep.subr.bf16.mxu0 0
    %204 = vmatpush2.bf16.msra.mxu0 0
    %205 = vmatprep.subr.bf16.mxu0 0
    %206 = vmatpush2.bf16.msra.mxu0 0
    %207 = vmatprep.subr.bf16.mxu0 0
    %208 = vmatpush2.bf16.msra.mxu0 0
    %209 = vmatprep.subr.bf16.mxu0 0
    %210 = vmatpush2.bf16.msra.mxu0 0
    %211 = vmatprep.subr.bf16.mxu0 0
    %212 = vmatpush2.bf16.msra.mxu0 0
    %213 = vmatprep.subr.bf16.mxu0 0
    %214 = vmatpush2.bf16.msra.mxu0 0
    %215 = vmatprep.subr.bf16.mxu0 0
    %216 = vmatpush2.bf16.msra.mxu0 0
    %217 = vmatprep.subr.bf16.mxu0 0
    %218 = vmatpush2.bf16.msra.mxu0 0
    %219 = vmatprep.mubr.bf16.mxu0 0
    %220 = vmatmul.mubr.bf16.gmra.mxu0 %v115
    %v221 = vpop.f32.mrf.mxu0
    %v222 = vadd.f32 %v137, %v221
    %v223 = vpop.f32.mrf.mxu0
    %v224 = vpop.f32.mrf.mxu0
    %v225 = vpop.f32.mrf.mxu0
    %226 = vdwg.mxu0
    %v227 = vmax.f32 %v222, 0.0
    %v228 = vpack.c.bf16 %v227, %v227
    %v229 = vld [vmem:[%s5] sm:$0xf]
    %v230 = vld [vmem:[%s5 + $0x4] sm:$0xf]
    %v231 = vld [vmem:[%s5 + $0x8] sm:$0xf]
    %v232 = vld [vmem:[%s5 + $0xc] sm:$0xf]
    %v233 = vld [vmem:[%s5 + $0x10] sm:$0xf]
    %v234 = vld [vmem:[%s5 + $0x14] sm:$0xf]
    %v235 = vld [vmem:[%s5 + $0x18] sm:$0xf]
    %v236 = vld [vmem:[%s5 + $0x1c] sm:$0xf]
    %v237 = vld [vmem:[%s6] sm:$0x1]
    %v239 = vlaneseq
    %v240 = vshrl.u32 %v239, 7
    %v241 = vsub.s32 0, %v240
    %v242 = vrot.slane %v237, %v241
    %v252 = vunpack.c.l.b16 %v229
    %v253 = vunpack.c.l.b16 %v230
    %v254 = vunpack.c.l.b16 %v231
    %v255 = vunpack.c.l.b16 %v232
    %v256 = vunpack.c.l.b16 %v233
    %v257 = vunpack.c.l.b16 %v234
    %v258 = vunpack.c.l.b16 %v235
    %v259 = vunpack.c.l.b16 %v236
    %v260 = vpack.c.b16 %v253, %v252
    %v261 = vpack.c.b16 %v255, %v254
    %v262 = vpack.c.b16 %v257, %v256
    %v263 = vpack.c.b16 %v259, %v258
    %vm268 = vcmask 523264
    %v270 = vsel %vm268, %v228, 0
    %272 = vmatprep.subr.bf16.mxu0 0
    %273 = vmatpush1.bf16.msra.mxu0 0
    %274 = vmatprep.subr.bf16.mxu0 0
    %275 = vmatpush1.bf16.msra.mxu0 0
    %276 = vmatprep.subr.bf16.mxu0 0
    %277 = vmatpush1.bf16.msra.mxu0 0
    %278 = vmatprep.subr.bf16.mxu0 0
    %279 = vmatpush1.bf16.msra.mxu0 0
    %280 = vmatprep.subr.bf16.mxu0 0
    %281 = vmatpush1.bf16.msra.mxu0 %v263
    %282 = vmatprep.subr.bf16.mxu0 0
    %283 = vmatpush1.bf16.msra.mxu0 %v262
    %284 = vmatprep.subr.bf16.mxu0 0
    %285 = vmatpush1.bf16.msra.mxu0 %v261
    %286 = vmatprep.subr.bf16.mxu0 0
    %287 = vmatpush1.bf16.msra.mxu0 %v260
    %288 = vmatprep.subr.bf16.mxu0 0
    %289 = vmatpush2.bf16.msra.mxu0 0
    %290 = vmatprep.subr.bf16.mxu0 0
    %291 = vmatpush2.bf16.msra.mxu0 0
    %292 = vmatprep.subr.bf16.mxu0 0
    %293 = vmatpush2.bf16.msra.mxu0 0
    %294 = vmatprep.subr.bf16.mxu0 0
    %295 = vmatpush2.bf16.msra.mxu0 0
    %296 = vmatprep.subr.bf16.mxu0 0
    %297 = vmatpush2.bf16.msra.mxu0 0
    %298 = vmatprep.subr.bf16.mxu0 0
    %299 = vmatpush2.bf16.msra.mxu0 0
    %300 = vmatprep.subr.bf16.mxu0 0
    %301 = vmatpush2.bf16.msra.mxu0 0
    %302 = vmatprep.subr.bf16.mxu0 0
    %303 = vmatpush2.bf16.msra.mxu0 0
    %304 = vmatprep.mubr.bf16.mxu0 0
    %305 = vmatmul.mubr.bf16.gmra.mxu0 %v270
    %v306 = vpop.f32.mrf.mxu0
    %v307 = vadd.f32 %v242, %v306
    %v308 = vpop.f32.mrf.mxu0
    %v309 = vpop.f32.mrf.mxu0
    %v310 = vpop.f32.mrf.mxu0
    %311 = vdwg.mxu0
    %312 = vmax.xlane.f32.xlu0 %v307
    %v313 = vpop.xlane.xlu0 %312
    %v314 = vsub.f32 %v307, %v313
    %v315 = vmul.f32 %v314, 1.442695
    %v316 = vpow.pop %v315
    %v317 = vpack.c.bf16 %v316, %v316
    %v318 = vld [vmem:[%s7] sm:$0xf]
    %v319 = vld [vmem:[%s7 + $0x4] sm:$0xf]
    %v320 = vld [vmem:[%s7 + $0x8] sm:$0xf]
    %v321 = vld [vmem:[%s7 + $0xc] sm:$0xf]
    %v322 = vld [vmem:[%s7 + $0x10] sm:$0xf]
    %v323 = vld [vmem:[%s7 + $0x14] sm:$0xf]
    %v324 = vld [vmem:[%s7 + $0x18] sm:$0xf]
    %v325 = vld [vmem:[%s7 + $0x1c] sm:$0xf]
    %v326 = vld [vmem:[%s7 + $0x20] sm:$0xf]
    %v327 = vld [vmem:[%s7 + $0x24] sm:$0xf]
    %v328 = vld [vmem:[%s7 + $0x28] sm:$0xf]
    %v329 = vld [vmem:[%s7 + $0x2c] sm:$0xf]
    %v330 = vld [vmem:[%s7 + $0x30] sm:$0xf]
    %v331 = vld [vmem:[%s7 + $0x34] sm:$0xf]
    %v332 = vld [vmem:[%s7 + $0x38] sm:$0xf]
    %v333 = vld [vmem:[%s7 + $0x3c] sm:$0xf]
    %v350 = vunpack.c.l.b16 %v318
    %v351 = vunpack.c.l.b16 %v319
    %v352 = vunpack.c.l.b16 %v320
    %v353 = vunpack.c.l.b16 %v321
    %v354 = vunpack.c.l.b16 %v322
    %v355 = vunpack.c.l.b16 %v323
    %v356 = vunpack.c.l.b16 %v324
    %v357 = vunpack.c.l.b16 %v325
    %v358 = vunpack.c.l.b16 %v326
    %v359 = vunpack.c.l.b16 %v327
    %v360 = vunpack.c.l.b16 %v328
    %v361 = vunpack.c.l.b16 %v329
    %v362 = vunpack.c.l.b16 %v330
    %v363 = vunpack.c.l.b16 %v331
    %v364 = vunpack.c.l.b16 %v332
    %v365 = vunpack.c.l.b16 %v333
    %v366 = vpack.c.b16 %v351, %v350
    %v367 = vpack.c.b16 %v353, %v352
    %v368 = vpack.c.b16 %v355, %v354
    %v369 = vpack.c.b16 %v357, %v356
    %v370 = vpack.c.b16 %v359, %v358
    %v371 = vpack.c.b16 %v361, %v360
    %v372 = vpack.c.b16 %v363, %v362
    %v373 = vpack.c.b16 %v365, %v364
    %382 = vmatprep.subr.bf16.mxu0 0
    %383 = vmatpush1.bf16.msra.mxu0 %v373
    %384 = vmatprep.subr.bf16.mxu0 0
    %385 = vmatpush1.bf16.msra.mxu0 %v372
    %386 = vmatprep.subr.bf16.mxu0 0
    %387 = vmatpush1.bf16.msra.mxu0 %v371
    %388 = vmatprep.subr.bf16.mxu0 0
    %389 = vmatpush1.bf16.msra.mxu0 %v370
    %390 = vmatprep.subr.bf16.mxu0 0
    %391 = vmatpush1.bf16.msra.mxu0 %v369
    %392 = vmatprep.subr.bf16.mxu0 0
    %393 = vmatpush1.bf16.msra.mxu0 %v368
    %394 = vmatprep.subr.bf16.mxu0 0
    %395 = vmatpush1.bf16.msra.mxu0 %v367
    %396 = vmatprep.subr.bf16.mxu0 0
    %397 = vmatpush1.bf16.msra.mxu0 %v366
    %398 = vmatprep.subr.bf16.mxu0 0
    %399 = vmatpush2.bf16.msra.mxu0 0
    %400 = vmatprep.subr.bf16.mxu0 0
    %401 = vmatpush2.bf16.msra.mxu0 0
    %402 = vmatprep.subr.bf16.mxu0 0
    %403 = vmatpush2.bf16.msra.mxu0 0
    %404 = vmatprep.subr.bf16.mxu0 0
    %405 = vmatpush2.bf16.msra.mxu0 0
    %406 = vmatprep.subr.bf16.mxu0 0
    %407 = vmatpush2.bf16.msra.mxu0 0
    %408 = vmatprep.subr.bf16.mxu0 0
    %409 = vmatpush2.bf16.msra.mxu0 0
    %410 = vmatprep.subr.bf16.mxu0 0
    %411 = vmatpush2.bf16.msra.mxu0 0
    %412 = vmatprep.subr.bf16.mxu0 0
    %413 = vmatpush2.bf16.msra.mxu0 0
    %414 = vmatprep.mubr.bf16.mxu0 0
    %415 = vmatmul.mubr.bf16.gmra.mxu0 %v317
    %v416 = vpop.f32.mrf.mxu0
    %v417 = vadd.f32 0.0, %v416
    %v418 = vpop.f32.mrf.mxu0
    %v419 = vpop.f32.mrf.mxu0
    %v420 = vpop.f32.mrf.mxu0
    %421 = vdwg.mxu0
    %v422 = vrcp.pop %v417
    %v423 = vmul.f32 %v316, %v422
    %v424 = vpack.c.bf16 %v423, %v423
    %425 = vst [vmem:[#allocation5] sm:$0xf] %v424
    // Predicated region
    $region38: #{tpu_custom_call.1} parent=1 // pred_check
      _
    $region39: #{tpu_custom_call.1} parent=1 // pred_check_branch
      %427 = sbr.rel (0) target = $region41
    $region40: #{tpu_custom_call.1} parent=1 // pred_region
      %s429 = ssub.s32 64, 64
      %430 = vsyncadd [#allocation4], %s429
      %s432 = sshll.u32 [#allocation5], 4
      %s433 = int_to_ptr.vmem [resolvable:$true] %s432
      %435 = dma.vmem_to_hbm [thread:$0]  %s433, 64, %s8, [#allocation4]
    $region41: #{tpu_custom_call.1} parent=1 // pred_fallthru
      _
    // Predicated region
    $region42: #{tpu_custom_call.1} parent=1 // pred_check
      _
    $region43: #{tpu_custom_call.1} parent=1 // pred_check_branch
      %437 = sbr.rel (0) target = $region45
    $region44: #{tpu_custom_call.1} parent=1 // pred_region
      %438 = dma.done [#allocation4], 64
    $region45: #{tpu_custom_call.1} parent=1 // pred_fallthru
      _
    %439 = vsyncpa [#allocation3], 1
    %440 = vsyncpa [#allocation4], 1

</llo_original>
